<compile_context>
chip_gen: v7x
topology: tpu7x:2x2x1
jax: 0.10.0
libtpu: 0.0.40
codegen_flags: <defaults>
</compile_context>

<pallas_src>
import jax
import jax.numpy as jnp
from jax import lax
from jax.experimental import pallas as pl
from jax.experimental.pallas import tpu as pltpu

PAD_TAG, START_TAG, END_TAG = "<pad>", "<start>", "<end>"

_VMEM_LIMIT = 48 * 1024 * 1024


def _vmem_spec():
    return pl.BlockSpec(memory_space=pltpu.MemorySpace.VMEM)


def _round_up(n, m):
    return ((n + m - 1) // m) * m


def _proj_row_block(rows, target):
    """Largest multiple-of-8 divisor of `rows` that is <= target (rows % 8 == 0)."""
    best, b = 8, 8
    while b <= min(rows, target):
        if rows % b == 0:
            best = b
        b += 8
    return best


# ---------------------------------------------------------------------------
# Hoisted LSTM input projection for BOTH directions (+ biases), bf16 outputs.
# One gridded GEMM over all S*B rows; the two direction halves are written to
# separate arrays so the recurrence can stream full-last-dim blocks.
# ---------------------------------------------------------------------------
def _gates_proj_kernel(x_ref, w_ref, b_ref, gf_ref, gb_ref):
    g4 = gf_ref.shape[-1]
    acc = jnp.dot(x_ref[...], w_ref[...],
                  preferred_element_type=jnp.float32) + b_ref[...]
    gf_ref[...] = acc[:, :g4].astype(jnp.bfloat16)
    gb_ref[...] = acc[:, g4:].astype(jnp.bfloat16)


def gates_projection(x_bf16, wih_combo, b_combo, *, row_block=512):
    R, H = x_bf16.shape
    G8 = wih_combo.shape[1]
    G4 = G8 // 2
    blk = _proj_row_block(R, row_block)
    return pl.pallas_call(
        _gates_proj_kernel,
        out_shape=(jax.ShapeDtypeStruct((R, G4), jnp.bfloat16),
                   jax.ShapeDtypeStruct((R, G4), jnp.bfloat16)),
        grid=(R // blk,),
        in_specs=[pl.BlockSpec((blk, H), lambda r: (r, 0)),
                  pl.BlockSpec((H, G8), lambda r: (0, 0)),
                  pl.BlockSpec((1, G8), lambda r: (0, 0))],
        out_specs=(pl.BlockSpec((blk, G4), lambda r: (r, 0)),
                   pl.BlockSpec((blk, G4), lambda r: (r, 0))),
        compiler_params=pltpu.CompilerParams(
            dimension_semantics=("parallel",),
            vmem_limit_bytes=_VMEM_LIMIT),
    )(x_bf16, wih_combo, b_combo)


# ---------------------------------------------------------------------------
# Time-chunked bidirectional LSTM recurrence with fused hidden2tags epilogue.
# Grid = (batch blocks ["parallel"], time chunks ["arbitrary"]).
# Forward consumes time chunk ts, backward consumes chunk nt-1-ts, so both
# directions share one serial sweep; per time step the kernel writes the
# lane-dense (Tp=128-padded) tag emissions for that direction's position.
# ---------------------------------------------------------------------------
def _make_bilstm_tags_kernel(s_valid, s_padded):
    needs_time_mask = (s_padded != s_valid)

    def kernel(gf_ref, gb_ref, whh_f_ref, whh_b_ref, wf_ref, wb_ref, bias_ref,
               emf_ref, emb_ref, hf, cf, hb, cb):
        Ts, Bb, G4 = gf_ref.shape
        Hh = G4 // 4
        ts = pl.program_id(1)
        nt = pl.num_programs(1)

        @pl.when(ts == 0)
        def _():
            hf[...] = jnp.zeros_like(hf)
            cf[...] = jnp.zeros_like(cf)
            hb[...] = jnp.zeros_like(hb)
            cb[...] = jnp.zeros_like(cb)

        whh_f = whh_f_ref[...]          # (Hh, 4Hh) bf16, chunk-invariant
        whh_b = whh_b_ref[...]
        wf = wf_ref[...]                # (Hh, Tp) bf16
        wb = wb_ref[...]
        bias = bias_ref[...]            # (1, Tp) f32

        def cell(pre, c):
            i = jax.nn.sigmoid(pre[:, 0 * Hh:1 * Hh])
            f = jax.nn.sigmoid(pre[:, 1 * Hh:2 * Hh])
            g = jnp.tanh(pre[:, 2 * Hh:3 * Hh])
            o = jax.nn.sigmoid(pre[:, 3 * Hh:4 * Hh])
            c_new = f * c + i * g
            return o * jnp.tanh(c_new), c_new

        @pl.loop(0, Ts)
        def _(i):
            ib = Ts - 1 - i

            # ---- forward direction, global time = ts*Ts + i -----------------
            pre_f = gf_ref[i].astype(jnp.float32) + jnp.dot(
                hf[...].astype(jnp.bfloat16), whh_f,
                preferred_element_type=jnp.float32)
            h_f, c_f = cell(pre_f, cf[...])
            hf[...] = h_f
            cf[...] = c_f
            emf_ref[i] = jnp.dot(h_f.astype(jnp.bfloat16), wf,
                                 preferred_element_type=jnp.float32)

            # ---- backward direction, global time = (nt-1-ts)*Ts + ib --------
            pre_b = gb_ref[ib].astype(jnp.float32) + jnp.dot(
                hb[...].astype(jnp.bfloat16), whh_b,
                preferred_element_type=jnp.float32)
            h_b, c_b = cell(pre_b, cb[...])
            if needs_time_mask:
                # padded tail timesteps must not perturb the backward state
                tb_global = (nt - 1 - ts) * Ts + ib
                bvalid = tb_global < s_valid
                h_b = jnp.where(bvalid, h_b, hb[...])
                c_b = jnp.where(bvalid, c_b, cb[...])
            hb[...] = h_b
            cb[...] = c_b
            emb_ref[ib] = jnp.dot(h_b.astype(jnp.bfloat16), wb,
                                  preferred_element_type=jnp.float32) + bias

    return kernel


def bilstm_tags(gates_f, gates_b, whh_f, whh_b, wf, wb, bias, *,
                s_valid, batch_block, time_block):
    # gates_f / gates_b: (Spad, Bpad, 4*Hh) bf16 (bias already folded in)
    Spad, Bpad, G4 = gates_f.shape
    Hh = G4 // 4
    Tp = wf.shape[1]
    Bb, Ts = batch_block, time_block
    nb, nt = Bpad // Bb, Spad // Ts
    kernel = _make_bilstm_tags_kernel(s_valid, Spad)
    return pl.pallas_call(
        kernel,
        out_shape=(jax.ShapeDtypeStruct((Spad, Bpad, Tp), jnp.float32),
                   jax.ShapeDtypeStruct((Spad, Bpad, Tp), jnp.float32)),
        grid=(nb, nt),
        in_specs=[
            pl.BlockSpec((Ts, Bb, G4), lambda b, t: (t, b, 0)),
            pl.BlockSpec((Ts, Bb, G4), lambda b, t: (nt - 1 - t, b, 0)),
            pl.BlockSpec((Hh, G4), lambda b, t: (0, 0)),
            pl.BlockSpec((Hh, G4), lambda b, t: (0, 0)),
            pl.BlockSpec((Hh, Tp), lambda b, t: (0, 0)),
            pl.BlockSpec((Hh, Tp), lambda b, t: (0, 0)),
            pl.BlockSpec((1, Tp), lambda b, t: (0, 0)),
        ],
        out_specs=(pl.BlockSpec((Ts, Bb, Tp), lambda b, t: (t, b, 0)),
                   pl.BlockSpec((Ts, Bb, Tp), lambda b, t: (nt - 1 - t, b, 0))),
        scratch_shapes=[pltpu.VMEM((Bb, Hh), jnp.float32)] * 4,  # hf, cf, hb, cb
        compiler_params=pltpu.CompilerParams(
            dimension_semantics=("parallel", "arbitrary"),
            vmem_limit_bytes=_VMEM_LIMIT),
    )(gates_f, gates_b, whh_f, whh_b, wf, wb, bias)


# ---------------------------------------------------------------------------
# CRF Viterbi decode (nbest=1): DP recursion with batch on the lane axis.
# ---------------------------------------------------------------------------
def _viterbi_kernel(em_ref, mask_ref, start_ref, end_ref, trans_ref,
                    score_ref, hist_ref):
    S, T, B = em_ref.shape
    score_ref[...] = start_ref[...] + em_ref[0]                      # (T, B)

    # loop-invariant broadcasts hoisted out of the serial recurrence
    trans_b = jnp.broadcast_to(trans_ref[...][:, :, None], (T, T, B))
    prev_iota = jnp.broadcast_to(
        lax.broadcasted_iota(jnp.int32, (T, T), 0)[:, :, None], (T, T, B))

    @pl.loop(1, S)
    def _(t):
        score = score_ref[...]                                       # (T_prev, B)
        x = score[:, None, :] + trans_b                              # (T_prev, T_next, B)
        best = jnp.max(x, axis=0)                                    # (T_next, B)
        # first-index argmax over the leading (prev) axis — elementwise selects
        # across vregs (no cross-lane reduce on the serial path).
        idx = jnp.min(jnp.where(x == best[None, :, :], prev_iota, T), axis=0)
        new_score = best + em_ref[t]                                 # (T_next, B)
        valid = mask_ref[t] > 0                                      # (1, B) int compare
        score_ref[...] = jnp.where(valid, new_score, score)
        # TODO(synk): hist could be int8 (T < 256) to cut its traffic 4x.
        hist_ref[t - 1] = idx.astype(jnp.int32)

    score_ref[...] = score_ref[...] + end_ref[...]


def _backtrack(history, final_score, lengths, pad_tag):
    # history: (S-1, T, B) int32 ; final_score: (T, B)
    S = history.shape[0] + 1
    B = final_score.shape[1]
    last_tag = jnp.argmax(final_score, axis=0).astype(jnp.int32)     # (B,)
    batch_idx = jnp.arange(B)

    def step(cur, t):
        ht = jnp.minimum(t, S - 2)
        prev = history[ht][cur, batch_idx]                           # (B,)
        follow = t <= lengths - 2
        cur_new = jnp.where(follow, prev, cur)
        tag_t = jnp.where(t < lengths, cur_new, jnp.int32(pad_tag))
        return cur_new, tag_t

    ts = jnp.arange(S - 1, -1, -1)
    _, tags_rev = lax.scan(step, last_tag, ts)
    return jnp.flip(tags_rev, axis=0).T                              # (B, S)


def crf_decode(preds_stb, mask_bs, crf_params, pad_tag_id):
    S, T, B = preds_stb.shape
    mask_stb = mask_bs.T.reshape(S, 1, B).astype(jnp.int32)
    start = crf_params["start"].reshape(T, 1)
    end = crf_params["end"].reshape(T, 1)
    trans = crf_params["transitions"]                                # trans[prev, next]
    score, hist = pl.pallas_call(
        _viterbi_kernel,
        out_shape=(jax.ShapeDtypeStruct((T, B), jnp.float32),
                   jax.ShapeDtypeStruct((S - 1, T, B), jnp.int32)),
        in_specs=[_vmem_spec()] * 5,
        out_specs=(_vmem_spec(), _vmem_spec()),
        compiler_params=pltpu.CompilerParams(vmem_limit_bytes=_VMEM_LIMIT),
    )(preds_stb, mask_stb, start, end, trans)
    lengths = jnp.sum(mask_bs.astype(jnp.int32), axis=1)
    return _backtrack(hist, score, lengths, pad_tag_id)


# ---------------------------------------------------------------------------
# Parameter init (deterministic, synthetic) + one-time weight packing
# ---------------------------------------------------------------------------
def init_params(key, vocab_size, hidden_dim, nb_outputs):
    H = hidden_dim
    Hh = H // 2
    ks = jax.random.split(key, 12)

    def rnd(k, shape, scale=0.1):
        return (scale * jax.random.normal(k, shape)).astype(jnp.float32)

    return {
        "embedding": rnd(ks[0], (vocab_size, H)),
        "lstm": {
            "wih_f": rnd(ks[1], (H, 4 * Hh)),
            "whh_f": rnd(ks[2], (Hh, 4 * Hh)),
            "b_f": rnd(ks[3], (1, 4 * Hh)),
            "wih_b": rnd(ks[4], (H, 4 * Hh)),
            "whh_b": rnd(ks[5], (Hh, 4 * Hh)),
            "b_b": rnd(ks[6], (1, 4 * Hh)),
        },
        "hidden2tags": {
            "w": rnd(ks[7], (H, nb_outputs)),
            "b": rnd(ks[8], (1, nb_outputs)),
        },
        "crf": {
            "start": rnd(ks[9], (nb_outputs,)),
            "end": rnd(ks[10], (nb_outputs,)),
            "transitions": rnd(ks[11], (nb_outputs, nb_outputs)),
        },
    }


def pack_params(p):
    """Weight layout prep: fused Wih, separate bf16 Whh, 128-padded hidden2tags."""
    lstm = p["lstm"]
    H = lstm["wih_f"].shape[0]
    Hh = H // 2
    wih_combo = jnp.concatenate([lstm["wih_f"], lstm["wih_b"]], axis=1)  # (H, 8Hh)
    b_combo = jnp.concatenate([lstm["b_f"], lstm["b_b"]], axis=1)        # (1, 8Hh)
    w = p["hidden2tags"]["w"]
    b = p["hidden2tags"]["b"]
    T = w.shape[1]
    Tp = _round_up(max(T, 128), 128)    # lane-dense tag outputs (unmasked stores)
    return {
        "embedding": p["embedding"],
        "lstm": {
            "wih_combo": wih_combo.astype(jnp.bfloat16),
            "b_combo": b_combo,
            "whh_f": lstm["whh_f"].astype(jnp.bfloat16),
            "whh_b": lstm["whh_b"].astype(jnp.bfloat16),
        },
        "hidden2tags": {
            "wf": jnp.pad(w[:Hh], ((0, 0), (0, Tp - T))).astype(jnp.bfloat16),
            "wb": jnp.pad(w[Hh:], ((0, 0), (0, Tp - T))).astype(jnp.bfloat16),
            "b": jnp.pad(b, ((0, 0), (0, Tp - T))),
        },
        "crf": p["crf"],
    }


# ---------------------------------------------------------------------------
# End-to-end forward (CamemBERTTagger.forward with mute_vae=True, dropout=False, k=1)
# ---------------------------------------------------------------------------
def camembert_tagger_forward(params, sentence, mask, pad_tag_id, *,
                             batch_block=128, time_block=16, row_block=512):
    # On v7x, pass batch_block=B//2 so the "parallel" batch grid spans both TCs.
    B, S = sentence.shape
    H = params["embedding"].shape[1]
    Hh = H // 2
    T = params["crf"]["transitions"].shape[0]

    Bb = min(batch_block, _round_up(B, 8))
    Bpad = _round_up(B, Bb)
    Ts = min(time_block, S)
    Spad = _round_up(S, Ts)

    # TODO(synk): pretrained CamemBERT encoder/tokenizer has no Pallas equivalent;
    # replaced by a deterministic embedding lookup producing last_hidden_state.
    # Time-major (S, B, H) from the start -> no downstream activation transposes.
    feats = params["embedding"][sentence.T]                          # (S, B, H) f32
    feats = jnp.pad(feats, ((0, Spad - S), (0, Bpad - B), (0, 0)))
    feats_bf16 = feats.astype(jnp.bfloat16).reshape(Spad * Bpad, H)

    lstm = params["lstm"]
    # Hoisted input projection for BOTH directions + biases: one gridded GEMM,
    # direction-split bf16 outputs streamed back to HBM.
    gates_f, gates_b = gates_projection(feats_bf16, lstm["wih_combo"],
                                        lstm["b_combo"], row_block=row_block)
    gates_f = gates_f.reshape(Spad, Bpad, 4 * Hh)
    gates_b = gates_b.reshape(Spad, Bpad, 4 * Hh)

    # Serial recurrence (time-chunked, batch-parallel) with fused hidden2tags.
    # dropout=False -> identity ; mute_vae=True -> BiLSTMVAE branch skipped.
    h2t = params["hidden2tags"]
    em_f, em_b = bilstm_tags(gates_f, gates_b, lstm["whh_f"], lstm["whh_b"],
                             h2t["wf"], h2t["wb"], h2t["b"],
                             s_valid=S, batch_block=Bb, time_block=Ts)

    # Combine direction contributions, drop padding, put batch on lanes for the
    # Viterbi DP (tiny (S, B, 128) array -> cheap XLA transpose).
    preds_stb = jnp.transpose((em_f + em_b)[:S, :B, :T], (0, 2, 1))  # (S, T, B)
    return crf_decode(preds_stb, mask, params["crf"], pad_tag_id)    # (B, S)


if __name__ == "__main__":
    B, S, H = 2, 8, 32
    dict2id = {START_TAG: 0, END_TAG: 1, PAD_TAG: 2,
               "NOUN": 3, "VERB": 4, "ADJ": 5, "DET": 6, "PUNCT": 7}
    nb_outputs = len(dict2id)
    vocab = 64

    key = jax.random.PRNGKey(0)
    kp, ks = jax.random.split(key)
    params = pack_params(init_params(kp, vocab, H, nb_outputs))

    sentence = jax.random.randint(ks, (B, S), 0, vocab, dtype=jnp.int32)
    lengths = jnp.array([S, 5], dtype=jnp.int32)
    mask = (jnp.arange(S)[None, :] < lengths[:, None]).astype(jnp.int32)

    paths = camembert_tagger_forward(params, sentence, mask, dict2id[PAD_TAG])
    paths = jax.block_until_ready(paths)
    assert paths.shape == (B, S)
    print("KERNEL_OK")
</pallas_src>

<mosaic_0001>
module attributes {stable_mosaic.version = 11 : i64} {
  func.func @_gates_proj_kernel(%arg0: i32, %arg1: memref<64x32xbf16, #tpu.memory_space<vmem>>, %arg2: memref<32x128xbf16, #tpu.memory_space<vmem>>, %arg3: memref<1x128xf32, #tpu.memory_space<vmem>>, %arg4: memref<64x64xbf16, #tpu.memory_space<vmem>>, %arg5: memref<64x64xbf16, #tpu.memory_space<vmem>>) attributes {dimension_semantics = [#tpu.dimension_semantics<parallel>], iteration_bounds = array<i64: 1>, scalar_prefetch = 0 : i64, scratch_operands = 0 : i64, tpu.core_type = #tpu.core_type<tc>, window_params = [{transform_indices = @transform_0, window_bounds = array<i64: 64, 32>}, {pipeline_mode = #tpu.pipeline_mode<synchronous>, transform_indices = @transform_1, window_bounds = array<i64: 32, 128>}, {pipeline_mode = #tpu.pipeline_mode<synchronous>, transform_indices = @transform_2, window_bounds = array<i64: 1, 128>}, {transform_indices = @transform_3, window_bounds = array<i64: 64, 64>}, {transform_indices = @transform_4, window_bounds = array<i64: 64, 64>}]} {
    %c0 = arith.constant 0 : index
    %c0_0 = arith.constant 0 : index
    %0 = vector.load %arg1[%c0, %c0_0] : memref<64x32xbf16, #tpu.memory_space<vmem>>, vector<64x32xbf16>
    %c0_1 = arith.constant 0 : index
    %c0_2 = arith.constant 0 : index
    %1 = vector.load %arg2[%c0_1, %c0_2] : memref<32x128xbf16, #tpu.memory_space<vmem>>, vector<32x128xbf16>
    %cst = arith.constant dense<0.000000e+00> : vector<64x128xf32>
    %2 = tpu.matmul %0, %1, %cst {dimension_numbers = #tpu.dot_dimension_numbers<[1], [0], [0], [1], [0, 0, 1, 1], [], []>} : vector<64x32xbf16>, vector<32x128xbf16>, vector<64x128xf32> -> vector<64x128xf32>
    %c0_3 = arith.constant 0 : index
    %c0_4 = arith.constant 0 : index
    %3 = vector.load %arg3[%c0_3, %c0_4] : memref<1x128xf32, #tpu.memory_space<vmem>>, vector<1x128xf32>
    %4 = vector.broadcast %3 : vector<1x128xf32> to vector<64x128xf32>
    %5 = arith.addf %2, %4 : vector<64x128xf32>
    %6 = vector.extract_strided_slice %5 {offsets = [0, 0], sizes = [64, 64], strides = [1, 1]} : vector<64x128xf32> to vector<64x64xf32>
    %7 = arith.truncf %6 : vector<64x64xf32> to vector<64x64xbf16>
    %c0_5 = arith.constant 0 : index
    %c0_6 = arith.constant 0 : index
    %8 = vector.load %arg4[%c0_5, %c0_6] : memref<64x64xbf16, #tpu.memory_space<vmem>>, vector<64x64xbf16>
    tpu.vector_store %arg4[%c0_5, %c0_6], %7 {strides = array<i32>} : memref<64x64xbf16, #tpu.memory_space<vmem>>, vector<64x64xbf16>,
    %9 = vector.extract_strided_slice %5 {offsets = [0, 64], sizes = [64, 64], strides = [1, 1]} : vector<64x128xf32> to vector<64x64xf32>
    %10 = arith.truncf %9 : vector<64x64xf32> to vector<64x64xbf16>
    %c0_7 = arith.constant 0 : index
    %c0_8 = arith.constant 0 : index
    %11 = vector.load %arg5[%c0_7, %c0_8] : memref<64x64xbf16, #tpu.memory_space<vmem>>, vector<64x64xbf16>
    tpu.vector_store %arg5[%c0_7, %c0_8], %10 {strides = array<i32>} : memref<64x64xbf16, #tpu.memory_space<vmem>>, vector<64x64xbf16>,
    return
  }
  func.func @transform_0(%arg0: i32) -> (i32, i32) {
    %c0_i32 = arith.constant 0 : i32
    %c0_i32_0 = arith.constant 0 : i32
    return %arg0, %c0_i32 : i32, i32
  }
  func.func @transform_1(%arg0: i32) -> (i32, i32) {
    %c0_i32 = arith.constant 0 : i32
    %c0_i32_0 = arith.constant 0 : i32
    %c0_i32_1 = arith.constant 0 : i32
    return %c0_i32, %c0_i32_0 : i32, i32
  }
  func.func @transform_2(%arg0: i32) -> (i32, i32) {
    %c0_i32 = arith.constant 0 : i32
    %c0_i32_0 = arith.constant 0 : i32
    %c0_i32_1 = arith.constant 0 : i32
    return %c0_i32, %c0_i32_0 : i32, i32
  }
  func.func @transform_3(%arg0: i32) -> (i32, i32) {
    %c0_i32 = arith.constant 0 : i32
    %c0_i32_0 = arith.constant 0 : i32
    return %arg0, %c0_i32 : i32, i32
  }
  func.func @transform_4(%arg0: i32) -> (i32, i32) {
    %c0_i32 = arith.constant 0 : i32
    %c0_i32_0 = arith.constant 0 : i32
    return %arg0, %c0_i32 : i32, i32
  }
}

</mosaic_0001>

<llo_original>
// kernel: tpu_custom_call.1
$region0: #{tpu_custom_call.1}
  #allocation0 [shape = 'u32[]', space=smem, size = 0x4, offset = 0x4, fixed_abs, tag = 'smem constant byte address 0x4 - core index']
  #allocation1 [shape = 'u32[144,128]{1,0:T(1,128)}', space=vmem, size = 0x12000, scoped, tag = 'internal scratch']
  %s0 = inlined_call_operand.vmem [shape: bf16[64,32], index: 0, kind: input, shape index: {}]
  %s1 = inlined_call_operand.vmem [shape: bf16[32,128], index: 1, kind: input, shape index: {}]
  %s2 = inlined_call_operand.vmem [shape: f32[1,128], index: 2, kind: input, shape index: {}]
  %s3 = inlined_call_operand.hbm [shape: bf16[64,64], index: 3, kind: output, shape index: {0}]
  %s4 = inlined_call_operand.hbm [shape: bf16[64,64], index: 4, kind: output, shape index: {1}]
  %5 = xla_tuple %s3, %s4
  %s6 = sld [smem:[#allocation0]]
  $region30: #{tpu_custom_call.1} parent=0
    _
  %s8 = ssub.s32 1, %s6
  %s9 = scalar_select 0, %s8, %s6
  $region1: #{tpu_custom_call.1} parent=0
    #allocation2 [shape = 'u8[16384]{0}', space=vmem, size = 0x4000, scoped, tag = 'output window, operand 0, single buffered']
    #allocation3 [shape = 's32[1]{0}', space=sflag, size = 0x4, scoped, tag = 'scoped memory for tpu_custom_call.1']
    #allocation4 [shape = 'u8[16384]{0}', space=vmem, size = 0x4000, scoped, tag = 'output window, operand 1, single buffered']
    #allocation5 [shape = 's32[1]{0}', space=sflag, size = 0x4, scoped, tag = 'scoped memory for tpu_custom_call.1']
    %10 = vsyncpa [#allocation3], 0
    %11 = vsyncpa [#allocation5], 0
    // Predicated region
    $region2: #{tpu_custom_call.1} parent=1 // pred_check
      _
    $region3: #{tpu_custom_call.1} parent=1 // pred_check_branch
      %13 = sbr.rel (0) target = $region5
    $region4: #{tpu_custom_call.1} parent=1 // pred_region
      _
    $region5: #{tpu_custom_call.1} parent=1 // pred_fallthru
      _
    // Predicated region
    $region6: #{tpu_custom_call.1} parent=1 // pred_check
      _
    $region7: #{tpu_custom_call.1} parent=1 // pred_check_branch
      %15 = sbr.rel (0) target = $region9
    $region8: #{tpu_custom_call.1} parent=1 // pred_region
      _
    $region9: #{tpu_custom_call.1} parent=1 // pred_fallthru
      _
    // Predicated region
    $region10: #{tpu_custom_call.1} parent=1 // pred_check
      _
    $region11: #{tpu_custom_call.1} parent=1 // pred_check_branch
      %17 = sbr.rel (0) target = $region13
    $region12: #{tpu_custom_call.1} parent=1 // pred_region
      _
    $region13: #{tpu_custom_call.1} parent=1 // pred_fallthru
      _
    %v19 = vld [vmem:[%s0] sm:$0xf]
    %v20 = vld [vmem:[%s0 + $0x4] sm:$0xf]
    %v21 = vld [vmem:[%s0 + $0x8] sm:$0xf]
    %v22 = vld [vmem:[%s0 + $0xc] sm:$0xf]
    %v23 = vld [vmem:[%s0 + $0x10] sm:$0xf]
    %v24 = vld [vmem:[%s0 + $0x14] sm:$0xf]
    %v25 = vld [vmem:[%s0 + $0x18] sm:$0xf]
    %v26 = vld [vmem:[%s0 + $0x1c] sm:$0xf]
    %v27 = vld [vmem:[%s1] sm:$0xf]
    %v28 = vld [vmem:[%s1 + $0x4] sm:$0xf]
    %v29 = vld [vmem:[%s1 + $0x8] sm:$0xf]
    %v30 = vld [vmem:[%s1 + $0xc] sm:$0xf]
    %v31 = vld [vmem:[%s2] sm:$0x1]
    %v33 = vlaneseq
    %v34 = vshrl.u32 %v33, 7
    %v35 = vsub.s32 0, %v34
    %v36 = vrot.slane %v31, %v35
    %v46 = vunpack.c.l.b16 %v19
    %v47 = vunpack.c.l.b16 %v20
    %v48 = vunpack.c.l.b16 %v21
    %v49 = vunpack.c.l.b16 %v22
    %v50 = vunpack.c.l.b16 %v23
    %v51 = vunpack.c.l.b16 %v24
    %v52 = vunpack.c.l.b16 %v25
    %v53 = vunpack.c.l.b16 %v26
    %v54 = vpack.c.b16 %v47, %v46
    %v55 = vpack.c.b16 %v49, %v48
    %v56 = vpack.c.b16 %v51, %v50
    %v57 = vpack.c.b16 %v53, %v52
    %v62 = vunpack.c.l.b16 %v27
    %v63 = vunpack.c.l.b16 %v28
    %v64 = vunpack.c.l.b16 %v29
    %v65 = vunpack.c.l.b16 %v30
    %v66 = vpack.c.b16 %v63, %v62
    %v67 = vpack.c.b16 %v65, %v64
    %vm70 = vcmask 261120
    %v72 = vsel %vm70, %v54, 0
    %v75 = vsel %vm70, %v55, 0
    %v78 = vsel %vm70, %v56, 0
    %v81 = vsel %vm70, %v57, 0
    %83 = vmatprep.subr.bf16.mxu0 0
    %84 = vmatpush1.bf16.msra.mxu0 %v66
    %85 = vmatprep.subr.bf16.mxu0 0
    %86 = vmatpush1.bf16.msra.mxu0 %v67
    %87 = vmatprep.subr.bf16.mxu0 0
    %88 = vmatpush1.bf16.msra.mxu0 0
    %89 = vmatprep.subr.bf16.mxu0 0
    %90 = vmatpush1.bf16.msra.mxu0 0
    %91 = vmatprep.subr.bf16.mxu0 0
    %92 = vmatpush1.bf16.msra.mxu0 0
    %93 = vmatprep.subr.bf16.mxu0 0
    %94 = vmatpush1.bf16.msra.mxu0 0
    %95 = vmatprep.subr.bf16.mxu0 0
    %96 = vmatpush1.bf16.msra.mxu0 0
    %97 = vmatprep.subr.bf16.mxu0 0
    %98 = vmatpush1.bf16.msra.mxu0 0
    %99 = vmatprep.subr.bf16.mxu0 0
    %100 = vmatpush1.bf16.msra.mxu0 0
    %101 = vmatprep.subr.bf16.mxu0 0
    %102 = vmatpush1.bf16.msra.mxu0 0
    %103 = vmatprep.subr.bf16.mxu0 0
    %104 = vmatpush1.bf16.msra.mxu0 0
    %105 = vmatprep.subr.bf16.mxu0 0
    %106 = vmatpush1.bf16.msra.mxu0 0
    %107 = vmatprep.subr.bf16.mxu0 0
    %108 = vmatpush1.bf16.msra.mxu0 0
    %109 = vmatprep.subr.bf16.mxu0 0
    %110 = vmatpush1.bf16.msra.mxu0 0
    %111 = vmatprep.subr.bf16.mxu0 0
    %112 = vmatpush1.bf16.msra.mxu0 0
    %113 = vmatprep.subr.bf16.mxu0 0
    %114 = vmatpush1.bf16.msra.mxu0 0
    %115 = vmatprep.mubr.bf16.mxu0 0
    %116 = vmatmul.mubr.bf16.gmra.mrb[0].mxu0 %v72
    %v117 = vpop.f32.mrb[0].mxu0
    %v118 = vadd.f32 %v36, %v117
    %v119 = vpop.f32.mrb[0].mxu0
    %v120 = vpop.f32.mrb[0].mxu0
    %v121 = vadd.f32 %v36, %v120
    %v122 = vpop.f32.mrb[0].mxu0
    %123 = vmatprep.mubr.bf16.mxu0 0
    %124 = vmatmul.mubr.bf16.gmra.mrb[0].mxu0 %v75
    %v125 = vpop.f32.mrb[0].mxu0
    %v126 = vadd.f32 %v36, %v125
    %v127 = vpop.f32.mrb[0].mxu0
    %v128 = vpop.f32.mrb[0].mxu0
    %v129 = vadd.f32 %v36, %v128
    %v130 = vpop.f32.mrb[0].mxu0
    %131 = vmatprep.mubr.bf16.mxu0 0
    %132 = vmatmul.mubr.bf16.gmra.mrb[0].mxu0 %v78
    %v133 = vpop.f32.mrb[0].mxu0
    %v134 = vadd.f32 %v36, %v133
    %v135 = vpop.f32.mrb[0].mxu0
    %v136 = vpop.f32.mrb[0].mxu0
    %v137 = vadd.f32 %v36, %v136
    %v138 = vpop.f32.mrb[0].mxu0
    %139 = vmatprep.mubr.bf16.mxu0 0
    %140 = vmatmul.mubr.bf16.gmra.mrb[0].mxu0 %v81
    %v141 = vpop.f32.mrb[0].mxu0
    %v142 = vadd.f32 %v36, %v141
    %v143 = vpop.f32.mrb[0].mxu0
    %v144 = vpop.f32.mrb[0].mxu0
    %v145 = vadd.f32 %v36, %v144
    %v146 = vpop.f32.mrb[0].mxu0
    %147 = vdwg.mxu0
    %v148 = vpack.c.bf16 %v121, %v118
    %v149 = vpack.c.bf16 %v129, %v126
    %v150 = vpack.c.bf16 %v137, %v134
    %v151 = vpack.c.bf16 %v145, %v142
    %v156 = vunpack.c.l.b16 %v148
    %v157 = vunpack.c.h.b16 %v148
    %v158 = vunpack.c.l.b16 %v149
    %v159 = vunpack.c.h.b16 %v149
    %v160 = vunpack.c.l.b16 %v150
    %v161 = vunpack.c.h.b16 %v150
    %v162 = vunpack.c.l.b16 %v151
    %v163 = vunpack.c.h.b16 %v151
    %v164 = vpack.c.b16 %v156, %v156
    %v165 = vpack.c.b16 %v157, %v157
    %v166 = vpack.c.b16 %v158, %v158
    %v167 = vpack.c.b16 %v159, %v159
    %v168 = vpack.c.b16 %v160, %v160
    %v169 = vpack.c.b16 %v161, %v161
    %v170 = vpack.c.b16 %v162, %v162
    %v171 = vpack.c.b16 %v163, %v163
    %vm180 = vcmask 519168
    %181 = vst.msk [vmem:[#allocation2] sm:$0xf] %vm180, %v164
    %182 = vst.msk [vmem:[#allocation2 + $0x4] sm:$0xf] %vm180, %v165
    %183 = vst.msk [vmem:[#allocation2 + $0x8] sm:$0xf] %vm180, %v166
    %184 = vst.msk [vmem:[#allocation2 + $0xc] sm:$0xf] %vm180, %v167
    %185 = vst.msk [vmem:[#allocation2 + $0x10] sm:$0xf] %vm180, %v168
    %186 = vst.msk [vmem:[#allocation2 + $0x14] sm:$0xf] %vm180, %v169
    %187 = vst.msk [vmem:[#allocation2 + $0x18] sm:$0xf] %vm180, %v170
    %188 = vst.msk [vmem:[#allocation2 + $0x1c] sm:$0xf] %vm180, %v171
    %189 = vrot.lane.b32.xlu0 %v164, 64
    %v190 = vpop.permute.xlu0 %189
    %191 = vrot.lane.b32.xlu0 %v165, 64
    %v192 = vpop.permute.xlu0 %191
    %193 = vrot.lane.b32.xlu0 %v166, 64
    %v194 = vpop.permute.xlu0 %193
    %195 = vrot.lane.b32.xlu0 %v167, 64
    %v196 = vpop.permute.xlu0 %195
    %197 = vrot.lane.b32.xlu0 %v168, 64
    %v198 = vpop.permute.xlu0 %197
    %199 = vrot.lane.b32.xlu0 %v169, 64
    %v200 = vpop.permute.xlu0 %199
    %201 = vrot.lane.b32.xlu0 %v170, 64
    %v202 = vpop.permute.xlu0 %201
    %203 = vrot.lane.b32.xlu0 %v171, 64
    %v204 = vpop.permute.xlu0 %203
    %213 = vst.msk [vmem:[#allocation4] sm:$0xf] %vm180, %v190
    %214 = vst.msk [vmem:[#allocation4 + $0x4] sm:$0xf] %vm180, %v192
    %215 = vst.msk [vmem:[#allocation4 + $0x8] sm:$0xf] %vm180, %v194
    %216 = vst.msk [vmem:[#allocation4 + $0xc] sm:$0xf] %vm180, %v196
    %217 = vst.msk [vmem:[#allocation4 + $0x10] sm:$0xf] %vm180, %v198
    %218 = vst.msk [vmem:[#allocation4 + $0x14] sm:$0xf] %vm180, %v200
    %219 = vst.msk [vmem:[#allocation4 + $0x18] sm:$0xf] %vm180, %v202
    %220 = vst.msk [vmem:[#allocation4 + $0x1c] sm:$0xf] %vm180, %v204
    // Predicated region
    $region14: #{tpu_custom_call.1} parent=1 // pred_check
      _
    $region15: #{tpu_custom_call.1} parent=1 // pred_check_branch
      %222 = sbr.rel (0) target = $region17
    $region16: #{tpu_custom_call.1} parent=1 // pred_region
      %s224 = ssub.s32 512, 512
      %225 = vsyncadd [#allocation3], %s224
      %s226 = sshll.u32 [#allocation2], 4
      %s227 = int_to_ptr.vmem [resolvable:$true] %s226
      %232 = dma.vmem_to_hbm [thread:$0]  %s227, 512, %s3, [#allocation3], 64, 64, 4
    $region17: #{tpu_custom_call.1} parent=1 // pred_fallthru
      _
    // Predicated region
    $region18: #{tpu_custom_call.1} parent=1 // pred_check
      _
    $region19: #{tpu_custom_call.1} parent=1 // pred_check_branch
      %234 = sbr.rel (0) target = $region21
    $region20: #{tpu_custom_call.1} parent=1 // pred_region
      %s236 = ssub.s32 512, 512
      %237 = vsyncadd [#allocation5], %s236
      %s238 = sshll.u32 [#allocation4], 4
      %s239 = int_to_ptr.vmem [resolvable:$true] %s238
      %244 = dma.vmem_to_hbm [thread:$0]  %s239, 512, %s4, [#allocation5], 64, 64, 4
    $region21: #{tpu_custom_call.1} parent=1 // pred_fallthru
      _
    // Predicated region
    $region22: #{tpu_custom_call.1} parent=1 // pred_check
      _
    $region23: #{tpu_custom_call.1} parent=1 // pred_check_branch
      %246 = sbr.rel (0) target = $region25
    $region24: #{tpu_custom_call.1} parent=1 // pred_region
      %247 = dma.done [#allocation3], 512
    $region25: #{tpu_custom_call.1} parent=1 // pred_fallthru
      _
    // Predicated region
    $region26: #{tpu_custom_call.1} parent=1 // pred_check
      _
    $region27: #{tpu_custom_call.1} parent=1 // pred_check_branch
      %249 = sbr.rel (0) target = $region29
    $region28: #{tpu_custom_call.1} parent=1 // pred_region
      %250 = dma.done [#allocation5], 512
    $region29: #{tpu_custom_call.1} parent=1 // pred_fallthru
      _
    %251 = vsyncpa [#allocation3], 1
    %252 = vsyncpa [#allocation5], 1

</llo_original>
